<compile_context>
chip_gen: v6e
topology: v6e:2x2x1
jax: 0.10.0
libtpu: 0.0.40
codegen_flags: <defaults>
</compile_context>

<pallas_src>
import functools

import jax
import jax.numpy as jnp
from jax.experimental import pallas as pl
from jax.experimental.pallas import tpu as pltpu


def _round_up(x, m):
    return (x + m - 1) // m * m


def _subcluster_kernel(x_ref, w1_ref, b1_ref, w2_ref, b2_ref, o_ref):
    # fc1 on the MXU: x cast to the (pre-cast) weight dtype, f32 accumulation.
    x = x_ref[...].astype(w1_ref.dtype)
    h = jnp.dot(x, w1_ref[...], preferred_element_type=jnp.float32)
    # bias + ReLU in f32 on the VPU (b1 is (1, H_pad), broadcasts over rows).
    h = jnp.maximum(h + b1_ref[...], 0.0)
    # fc2 (block-diagonal masked weights baked in, zero-padded extra rows).
    o = jnp.dot(h.astype(w2_ref.dtype), w2_ref[...],
                preferred_element_type=jnp.float32)
    o_ref[...] = (o + b2_ref[...]).astype(o_ref.dtype)


@functools.partial(jax.jit, static_argnames=("tile_m", "out_dtype"))
def subclustering_forward(x, w1, b1, w2, b2, *, tile_m=1024,
                          out_dtype=jnp.float32):
    """Forward pass. w1/b1/w2/b2 are the prepared (H-padded, pre-cast) params.

    Returns (N, 2*K) in `out_dtype` (default f32, matching the PyTorch ref).
    """
    N, D = x.shape
    H = w1.shape[1]          # hidden_dim*K, zero-padded to a multiple of 128
    O = w2.shape[1]          # 2*K, NOT padded (narrow lane-masked output)

    # Row tile: multiple of 8 (sublane), capped at ~N/2 so the grid has at
    # least 2 steps -> both TensorCores get work on v7x.
    tm = max(8, min(_round_up(tile_m, 8), _round_up(pl.cdiv(N, 2), 8)))
    grid = (pl.cdiv(N, tm),)

    return pl.pallas_call(
        _subcluster_kernel,
        out_shape=jax.ShapeDtypeStruct((N, O), out_dtype),
        grid=grid,
        in_specs=[
            pl.BlockSpec((tm, D), lambda i: (i, 0)),   # x: tiled over rows
            pl.BlockSpec((D, H), lambda i: (0, 0)),    # w1: resident in VMEM
            pl.BlockSpec((1, H), lambda i: (0, 0)),    # b1: resident (f32)
            pl.BlockSpec((H, O), lambda i: (0, 0)),    # w2: resident
            pl.BlockSpec((1, O), lambda i: (0, 0)),    # b2: resident (f32)
        ],
        out_specs=pl.BlockSpec((tm, O), lambda i: (i, 0)),
        compiler_params=pltpu.CompilerParams(
            dimension_semantics=("parallel",)),
    )(x, w1, b1, w2, b2)


def init_params(key, codes_dim, hidden_dim, K, dtype=jnp.float32):
    """Deterministic PyTorch-Linear-style init (uniform(-1/sqrt(fan_in), ..)),
    with the block-diagonal fc2 mask applied — unpadded, logical shapes."""
    H = hidden_dim * K
    O = 2 * K
    k1, k2, k3, k4 = jax.random.split(key, 4)

    bound1 = 1.0 / jnp.sqrt(codes_dim)
    w1 = jax.random.uniform(k1, (codes_dim, H), dtype, -bound1, bound1)
    b1 = jax.random.uniform(k2, (1, H), dtype, -bound1, bound1)

    bound2 = 1.0 / jnp.sqrt(H)
    w2 = jax.random.uniform(k3, (H, O), dtype, -bound2, bound2)
    b2 = jax.random.uniform(k4, (1, O), dtype, -bound2, bound2)

    # gradient_mask_fc2 from __init__ (transposed layout): block-diagonal,
    # hidden_dim rows map to 2 outputs per sub-cluster k.
    row_k = jnp.arange(H) // hidden_dim
    col_k = jnp.arange(O) // 2
    mask = (row_k[:, None] == col_k[None, :]).astype(dtype)
    w2 = w2 * mask
    return w1, b1, w2, b2


def prepare_params(w1, b1, w2, b2, *, weight_dtype=jnp.float32, lane=128):
    """One-time param prep: zero-pad H to a multiple of 128 (numerically exact:
    padded hidden units have zero weight + zero bias, ReLU(0)=0) and cast the
    weight matrices to the desired matmul dtype once.  Biases stay f32
    (elementwise VPU path).  O (=2K) is intentionally NOT padded."""
    H = w1.shape[1]
    H_pad = _round_up(H, lane)
    w1p = jnp.pad(w1, ((0, 0), (0, H_pad - H))).astype(weight_dtype)
    b1p = jnp.pad(b1, ((0, 0), (0, H_pad - H)))                 # f32
    w2p = jnp.pad(w2, ((0, H_pad - H), (0, 0))).astype(weight_dtype)
    return w1p, b1p, w2p, b2


def reference_forward(x, w1, b1, w2, b2):
    h = jnp.maximum(x @ w1 + b1, 0.0)
    return h @ w2 + b2


# TODO(synk): update_K_split / update_K_merge are host-side parameter
# bookkeeping (re-allocating / permuting Linear weights between calls); they
# are not kernel work and are left to the caller's param-management code.


if __name__ == "__main__":
    # Small, module-consistent shapes: codes_dim=64, K=4, hidden_dim=50.
    codes_dim, hidden_dim, K = 64, 50, 4
    O = 2 * K

    key = jax.random.PRNGKey(0)
    kx, kp, kx2 = jax.random.split(key, 3)
    w1, b1, w2, b2 = init_params(kp, codes_dim, hidden_dim, K)

    # --- case 1: tiny batch (tm=8, 2 grid steps), f32 weights ---------------
    pw1, pb1, pw2, pb2 = prepare_params(w1, b1, w2, b2)
    N = 16
    x = jax.random.normal(kx, (N, codes_dim), dtype=jnp.float32)
    out = jax.block_until_ready(subclustering_forward(x, pw1, pb1, pw2, pb2))
    ref = reference_forward(x, w1, b1, w2, b2)
    assert out.shape == (N, O), out.shape
    assert out.dtype == jnp.float32, out.dtype
    assert jnp.allclose(out, ref, atol=1e-4, rtol=1e-4), "f32 mismatch vs ref"

    # --- case 2: multi-tile grid with a PARTIAL final block -----------------
    # N2=300 rows with tm=128 -> grid of 3 steps, last block has 44 live rows;
    # exercises the no-row-pad cdiv grid and masked partial-block writeback.
    N2 = 300
    x2 = jax.random.normal(kx2, (N2, codes_dim), dtype=jnp.float32)
    out2 = jax.block_until_ready(
        subclustering_forward(x2, pw1, pb1, pw2, pb2, tile_m=128))
    ref2 = reference_forward(x2, w1, b1, w2, b2)
    assert out2.shape == (N2, O), out2.shape
    assert jnp.allclose(out2, ref2, atol=1e-4, rtol=1e-4), "tiled f32 mismatch"

    # --- case 3: bf16 MXU operands (pre-cast weights), f32 accum/output -----
    bw1, bb1, bw2, bb2 = prepare_params(w1, b1, w2, b2,
                                        weight_dtype=jnp.bfloat16)
    out_bf16 = jax.block_until_ready(
        subclustering_forward(x2, bw1, bb1, bw2, bb2, tile_m=128))
    assert out_bf16.shape == (N2, O), out_bf16.shape
    assert jnp.allclose(out_bf16, ref2, atol=3e-2, rtol=3e-2), "bf16 mismatch"

    print("KERNEL_OK")
</pallas_src>

<mosaic_0001>
module attributes {stable_mosaic.version = 11 : i64} {
  func.func @_subcluster_kernel(%arg0: i32, %arg1: memref<8x64xf32, #tpu.memory_space<vmem>>, %arg2: memref<64x256xf32, #tpu.memory_space<vmem>>, %arg3: memref<1x256xf32, #tpu.memory_space<vmem>>, %arg4: memref<256x8xf32, #tpu.memory_space<vmem>>, %arg5: memref<1x8xf32, #tpu.memory_space<vmem>>, %arg6: memref<8x8xf32, #tpu.memory_space<vmem>>) attributes {dimension_semantics = [#tpu.dimension_semantics<parallel>], iteration_bounds = array<i64: 2>, scalar_prefetch = 0 : i64, scratch_operands = 0 : i64, tpu.core_type = #tpu.core_type<tc>, window_params = [{transform_indices = @transform_0, window_bounds = array<i64: 8, 64>}, {pipeline_mode = #tpu.pipeline_mode<synchronous>, transform_indices = @transform_1, window_bounds = array<i64: 64, 256>}, {pipeline_mode = #tpu.pipeline_mode<synchronous>, transform_indices = @transform_2, window_bounds = array<i64: 1, 256>}, {pipeline_mode = #tpu.pipeline_mode<synchronous>, transform_indices = @transform_3, window_bounds = array<i64: 256, 8>}, {pipeline_mode = #tpu.pipeline_mode<synchronous>, transform_indices = @transform_4, window_bounds = array<i64: 1, 8>}, {transform_indices = @transform_5, window_bounds = array<i64: 8, 8>}]} {
    %c0 = arith.constant 0 : index
    %c0_0 = arith.constant 0 : index
    %0 = vector.load %arg1[%c0, %c0_0] : memref<8x64xf32, #tpu.memory_space<vmem>>, vector<8x64xf32>
    %c0_1 = arith.constant 0 : index
    %c0_2 = arith.constant 0 : index
    %1 = vector.load %arg2[%c0_1, %c0_2] : memref<64x256xf32, #tpu.memory_space<vmem>>, vector<64x256xf32>
    %cst = arith.constant dense<0.000000e+00> : vector<8x256xf32>
    %2 = tpu.matmul %0, %1, %cst {dimension_numbers = #tpu.dot_dimension_numbers<[1], [0], [0], [1], [0, 0, 1, 1], [], []>} : vector<8x64xf32>, vector<64x256xf32>, vector<8x256xf32> -> vector<8x256xf32>
    %c0_3 = arith.constant 0 : index
    %c0_4 = arith.constant 0 : index
    %3 = vector.load %arg3[%c0_3, %c0_4] : memref<1x256xf32, #tpu.memory_space<vmem>>, vector<1x256xf32>
    %4 = vector.broadcast %3 : vector<1x256xf32> to vector<8x256xf32>
    %5 = arith.addf %2, %4 : vector<8x256xf32>
    %cst_5 = arith.constant 0.000000e+00 : f32
    %6 = vector.broadcast %cst_5 : f32 to vector<8x256xf32>
    %7 = arith.maximumf %5, %6 : vector<8x256xf32>
    %c0_6 = arith.constant 0 : index
    %c0_7 = arith.constant 0 : index
    %8 = vector.load %arg4[%c0_6, %c0_7] : memref<256x8xf32, #tpu.memory_space<vmem>>, vector<256x8xf32>
    %cst_8 = arith.constant dense<0.000000e+00> : vector<8x8xf32>
    %9 = tpu.matmul %7, %8, %cst_8 {dimension_numbers = #tpu.dot_dimension_numbers<[1], [0], [0], [1], [0, 0, 1, 1], [], []>} : vector<8x256xf32>, vector<256x8xf32>, vector<8x8xf32> -> vector<8x8xf32>
    %c0_9 = arith.constant 0 : index
    %c0_10 = arith.constant 0 : index
    %10 = vector.load %arg5[%c0_9, %c0_10] : memref<1x8xf32, #tpu.memory_space<vmem>>, vector<1x8xf32>
    %11 = vector.broadcast %10 : vector<1x8xf32> to vector<8x8xf32>
    %12 = arith.addf %9, %11 : vector<8x8xf32>
    %c0_11 = arith.constant 0 : index
    %c0_12 = arith.constant 0 : index
    %13 = vector.load %arg6[%c0_11, %c0_12] : memref<8x8xf32, #tpu.memory_space<vmem>>, vector<8x8xf32>
    tpu.vector_store %arg6[%c0_11, %c0_12], %12 {strides = array<i32>} : memref<8x8xf32, #tpu.memory_space<vmem>>, vector<8x8xf32>,
    return
  }
  func.func @transform_0(%arg0: i32) -> (i32, i32) {
    %c0_i32 = arith.constant 0 : i32
    %c0_i32_0 = arith.constant 0 : i32
    return %arg0, %c0_i32 : i32, i32
  }
  func.func @transform_1(%arg0: i32) -> (i32, i32) {
    %c0_i32 = arith.constant 0 : i32
    %c0_i32_0 = arith.constant 0 : i32
    %c0_i32_1 = arith.constant 0 : i32
    return %c0_i32, %c0_i32_0 : i32, i32
  }
  func.func @transform_2(%arg0: i32) -> (i32, i32) {
    %c0_i32 = arith.constant 0 : i32
    %c0_i32_0 = arith.constant 0 : i32
    %c0_i32_1 = arith.constant 0 : i32
    return %c0_i32, %c0_i32_0 : i32, i32
  }
  func.func @transform_3(%arg0: i32) -> (i32, i32) {
    %c0_i32 = arith.constant 0 : i32
    %c0_i32_0 = arith.constant 0 : i32
    %c0_i32_1 = arith.constant 0 : i32
    return %c0_i32, %c0_i32_0 : i32, i32
  }
  func.func @transform_4(%arg0: i32) -> (i32, i32) {
    %c0_i32 = arith.constant 0 : i32
    %c0_i32_0 = arith.constant 0 : i32
    %c0_i32_1 = arith.constant 0 : i32
    return %c0_i32, %c0_i32_0 : i32, i32
  }
  func.func @transform_5(%arg0: i32) -> (i32, i32) {
    %c0_i32 = arith.constant 0 : i32
    %c0_i32_0 = arith.constant 0 : i32
    return %arg0, %c0_i32 : i32, i32
  }
}

</mosaic_0001>

<llo_original>
// kernel: subclustering_forward.1
$region0: #{subclustering_forward.1}
  #allocation0 [shape = 'u32[]', space=smem, size = 0x4, offset = 0x4, fixed_abs, tag = 'smem constant byte address 0x4 - core index']
  #allocation1 [shape = 'u32[144,128]{1,0:T(1,128)}', space=vmem, size = 0x12000, scoped, tag = 'internal scratch']
  %s0 = inlined_call_operand.vmem [shape: f32[16,64], index: 0, kind: input, shape index: {}]
  %s1 = inlined_call_operand.vmem [shape: f32[64,256], index: 1, kind: input, shape index: {}]
  %s2 = inlined_call_operand.vmem [shape: f32[1,256], index: 2, kind: input, shape index: {}]
  %s3 = inlined_call_operand.vmem [shape: f32[256,8], index: 3, kind: input, shape index: {}]
  %s4 = inlined_call_operand.vmem [shape: f32[1,8], index: 4, kind: input, shape index: {}]
  %s5 = inlined_call_operand.vmem [shape: f32[16,8], index: 5, kind: output, shape index: {}]
  %s6 = sld [smem:[#allocation0]]
  $region53: #{subclustering_forward.1} parent=0
    _
  %s8 = ssub.s32 1, %s6
  %s9 = scalar_select 0, %s8, %s6
  loop: start=0, step=1, limit=4
  $region2: #{subclustering_forward.1} parent=0 // loop_pre_header
    _
  $region3: #{subclustering_forward.1} parent=0 // loop_header
    %s11 = sphi 0, %s15
    %p12 = scmp.ge.s32.totalorder %s11, 4
    %s21 = sphi 0, %s23
    %s24 = sphi 0, %s21
    %s25 = sphi 0, %s24
    %s41 = sphi 0, %s25
    %s45 = sphi 0, %s45
    %s47 = sphi 0, %s45
    %s48 = sphi 0, %s47
    %s62 = sphi 0, %s48
    %s66 = sphi 0, %s66
    %s68 = sphi 0, %s66
    %s69 = sphi 0, %s68
    %s83 = sphi 0, %s69
    %s87 = sphi 0, %s87
    %s89 = sphi 0, %s87
    %s90 = sphi 0, %s89
    %s104 = sphi 0, %s90
    %s108 = sphi 0, %s108
    %s110 = sphi 0, %s108
    %s111 = sphi 0, %s110
    %s125 = sphi 0, %s111
    %s131 = sphi 0, %s133
    %s134 = sphi 0, %s131
    %s135 = sphi 0, %s134
    %s151 = sphi 0, %s135
  $region4: #{subclustering_forward.1} parent=0 // loop_header_branch
    %14 = sbr.rel (%p12) target = $region8
  $region5: #{subclustering_forward.1} parent=0 // loop_body
    %s16 = ssub.s32 %s11, 1
    %s17 = ssub.s32 %s11, 2
    %s18 = sadd.s32 %s11, 1
    %s19 = ssub.s32 %s11, %s18
    %p20 = scmp.eq.s32.totalorder %s19, 0
    %s22 = sadd.s32 %s21, 1
    %s23 = scalar_select %p20, %s21, %s22
    %p26 = pneg %p20
    %p27 = scmp.eq.s32.totalorder %s11, 1
    %p28 = por %p26, %p27
    %p29 = scmp.ne.s32.totalorder %s21, %s24
    %p30 = scmp.eq.s32.totalorder %s11, 0
    %p31 = por %p29, %p30
    %p32 = scmp.ne.s32.totalorder %s21, %s24
    %p33 = scmp.eq.s32.totalorder %s16, 1
    %p34 = por %p32, %p33
    %p35 = scmp.ne.s32.totalorder %s24, %s25
    %p36 = scmp.eq.s32.totalorder %s16, 0
    %p37 = por %p35, %p36
    %p38 = scmp.ne.s32.totalorder %s24, %s25
    %p39 = scmp.eq.s32.totalorder %s17, 1
    %p40 = por %p38, %p39
    %p42 = scmp.ne.s32.totalorder %s25, %s41
    %p43 = scmp.eq.s32.totalorder %s17, 0
    %p44 = por %p42, %p43
    %s46 = sadd.s32 %s45, 1
    %p49 = scmp.eq.s32.totalorder %s11, 1
    %p50 = scmp.ne.s32.totalorder %s45, %s47
    %p51 = scmp.eq.s32.totalorder %s11, 0
    %p52 = por %p50, %p51
    %p53 = scmp.ne.s32.totalorder %s45, %s47
    %p54 = scmp.eq.s32.totalorder %s16, 1
    %p55 = por %p53, %p54
    %p56 = scmp.ne.s32.totalorder %s47, %s48
    %p57 = scmp.eq.s32.totalorder %s16, 0
    %p58 = por %p56, %p57
    %p59 = scmp.ne.s32.totalorder %s47, %s48
    %p60 = scmp.eq.s32.totalorder %s17, 1
    %p61 = por %p59, %p60
    %p63 = scmp.ne.s32.totalorder %s48, %s62
    %p64 = scmp.eq.s32.totalorder %s17, 0
    %p65 = por %p63, %p64
    %s67 = sadd.s32 %s66, 1
    %p70 = scmp.eq.s32.totalorder %s11, 1
    %p71 = scmp.ne.s32.totalorder %s66, %s68
    %p72 = scmp.eq.s32.totalorder %s11, 0
    %p73 = por %p71, %p72
    %p74 = scmp.ne.s32.totalorder %s66, %s68
    %p75 = scmp.eq.s32.totalorder %s16, 1
    %p76 = por %p74, %p75
    %p77 = scmp.ne.s32.totalorder %s68, %s69
    %p78 = scmp.eq.s32.totalorder %s16, 0
    %p79 = por %p77, %p78
    %p80 = scmp.ne.s32.totalorder %s68, %s69
    %p81 = scmp.eq.s32.totalorder %s17, 1
    %p82 = por %p80, %p81
    %p84 = scmp.ne.s32.totalorder %s69, %s83
    %p85 = scmp.eq.s32.totalorder %s17, 0
    %p86 = por %p84, %p85
    %s88 = sadd.s32 %s87, 1
    %p91 = scmp.eq.s32.totalorder %s11, 1
    %p92 = scmp.ne.s32.totalorder %s87, %s89
    %p93 = scmp.eq.s32.totalorder %s11, 0
    %p94 = por %p92, %p93
    %p95 = scmp.ne.s32.totalorder %s87, %s89
    %p96 = scmp.eq.s32.totalorder %s16, 1
    %p97 = por %p95, %p96
    %p98 = scmp.ne.s32.totalorder %s89, %s90
    %p99 = scmp.eq.s32.totalorder %s16, 0
    %p100 = por %p98, %p99
    %p101 = scmp.ne.s32.totalorder %s89, %s90
    %p102 = scmp.eq.s32.totalorder %s17, 1
    %p103 = por %p101, %p102
    %p105 = scmp.ne.s32.totalorder %s90, %s104
    %p106 = scmp.eq.s32.totalorder %s17, 0
    %p107 = por %p105, %p106
    %s109 = sadd.s32 %s108, 1
    %p112 = scmp.eq.s32.totalorder %s11, 1
    %p113 = scmp.ne.s32.totalorder %s108, %s110
    %p114 = scmp.eq.s32.totalorder %s11, 0
    %p115 = por %p113, %p114
    %p116 = scmp.ne.s32.totalorder %s108, %s110
    %p117 = scmp.eq.s32.totalorder %s16, 1
    %p118 = por %p116, %p117
    %p119 = scmp.ne.s32.totalorder %s110, %s111
    %p120 = scmp.eq.s32.totalorder %s16, 0
    %p121 = por %p119, %p120
    %p122 = scmp.ne.s32.totalorder %s110, %s111
    %p123 = scmp.eq.s32.totalorder %s17, 1
    %p124 = por %p122, %p123
    %p126 = scmp.ne.s32.totalorder %s111, %s125
    %p127 = scmp.eq.s32.totalorder %s17, 0
    %p128 = por %p126, %p127
    %s129 = ssub.s32 %s11, %s18
    %p130 = scmp.eq.s32.totalorder %s129, 0
    %s132 = sadd.s32 %s131, 1
    %s133 = scalar_select %p130, %s131, %s132
    %p136 = pneg %p130
    %p137 = scmp.eq.s32.totalorder %s11, 1
    %p138 = por %p136, %p137
    %p139 = scmp.ne.s32.totalorder %s131, %s134
    %p140 = scmp.eq.s32.totalorder %s11, 0
    %p141 = por %p139, %p140
    %p142 = scmp.ne.s32.totalorder %s131, %s134
    %p143 = scmp.eq.s32.totalorder %s16, 1
    %p144 = por %p142, %p143
    %p145 = scmp.ne.s32.totalorder %s134, %s135
    %p146 = scmp.eq.s32.totalorder %s16, 0
    %p147 = por %p145, %p146
    %p148 = scmp.ne.s32.totalorder %s134, %s135
    %p149 = scmp.eq.s32.totalorder %s17, 1
    %p150 = por %p148, %p149
    %p152 = scmp.ne.s32.totalorder %s135, %s151
    %p153 = scmp.eq.s32.totalorder %s17, 0
    %p154 = por %p152, %p153
    %p155 = scmp.le.s32.totalorder 1, %s11
    %p156 = scmp.lt.s32.totalorder %s11, 3
    %p157 = pnand %p155, %p156
    %p158 = pneg %p157
    // Predicated region
    $region9: #{subclustering_forward.1} parent=5 // pred_check
      _
    $region10: #{subclustering_forward.1} parent=5 // pred_check_branch
      %160 = sbr.rel (%p157) target = $region12
    $region11: #{subclustering_forward.1} parent=5 // pred_region
      %s161 = ssub.s32 %s11, 1
      // Predicated region
      $region13: #{subclustering_forward.1} parent=11 // pred_check
        %p162 = pneg %p58
      $region14: #{subclustering_forward.1} parent=11 // pred_check_branch
        %164 = sbr.rel (%p162) target = $region16
      $region15: #{subclustering_forward.1} parent=11 // pred_region
        _
      $region16: #{subclustering_forward.1} parent=11 // pred_fallthru
        _
      // Predicated region
      $region17: #{subclustering_forward.1} parent=11 // pred_check
        %p165 = pneg %p79
      $region18: #{subclustering_forward.1} parent=11 // pred_check_branch
        %167 = sbr.rel (%p165) target = $region20
      $region19: #{subclustering_forward.1} parent=11 // pred_region
        _
      $region20: #{subclustering_forward.1} parent=11 // pred_fallthru
        _
      // Predicated region
      $region21: #{subclustering_forward.1} parent=11 // pred_check
        %p168 = pneg %p100
      $region22: #{subclustering_forward.1} parent=11 // pred_check_branch
        %170 = sbr.rel (%p168) target = $region24
      $region23: #{subclustering_forward.1} parent=11 // pred_region
        _
      $region24: #{subclustering_forward.1} parent=11 // pred_fallthru
        _
      // Predicated region
      $region25: #{subclustering_forward.1} parent=11 // pred_check
        %p171 = pneg %p121
      $region26: #{subclustering_forward.1} parent=11 // pred_check_branch
        %173 = sbr.rel (%p171) target = $region28
      $region27: #{subclustering_forward.1} parent=11 // pred_region
        _
      $region28: #{subclustering_forward.1} parent=11 // pred_fallthru
        _
    $region12: #{subclustering_forward.1} parent=5 // pred_fallthru
      _
    %p174 = scmp.lt.s32.totalorder %s11, 2
    // Predicated region
    $region29: #{subclustering_forward.1} parent=5 // pred_check
      %p175 = pneg %p174
    $region30: #{subclustering_forward.1} parent=5 // pred_check_branch
      %177 = sbr.rel (%p175) target = $region32
    $region31: #{subclustering_forward.1} parent=5 // pred_region
      // Predicated region
      $region33: #{subclustering_forward.1} parent=31 // pred_check
        %p178 = pneg %p31
      $region34: #{subclustering_forward.1} parent=31 // pred_check_branch
        %180 = sbr.rel (%p178) target = $region36
      $region35: #{subclustering_forward.1} parent=31 // pred_region
        %p181 = scmp.lt.s32.totalorder %s11, 1
        %s182 = scalar_select %p181, %s11, 1
        %s183 = smul.addr %s182, 8
        %s184 = scalar_lea.vmem %s0, %s183
      $region36: #{subclustering_forward.1} parent=31 // pred_fallthru
        _
    $region32: #{subclustering_forward.1} parent=5 // pred_fallthru
      _
    %p185 = scmp.le.s32.totalorder 1, %s11
    %p186 = scmp.lt.s32.totalorder %s11, 3
    %p187 = pnand %p185, %p186
    %p188 = pneg %p187
    // Predicated region
    $region37: #{subclustering_forward.1} parent=5 // pred_check
      _
    $region38: #{subclustering_forward.1} parent=5 // pred_check_branch
      %190 = sbr.rel (%p187) target = $region40
    $region39: #{subclustering_forward.1} parent=5 // pred_region
      %s191 = ssub.s32 %s11, 1
      %p192 = scmp.lt.s32.totalorder %s16, 1
      %s193 = scalar_select %p192, %s16, 1
      %s194 = smul.addr %s193, 8
      %s195 = scalar_lea.vmem %s0, %s194
      %p196 = pneg %p37
      %p197 = pneg %p34
      %p198 = pneg %p58
      %p199 = pneg %p55
      %p200 = pneg %p79
      %p201 = pneg %p76
      %p202 = pneg %p100
      %p203 = pneg %p97
      %p204 = pneg %p121
      %p205 = pneg %p118
      %p206 = pneg %p147
      %p207 = pneg %p144
      %p208 = scmp.lt.s32.totalorder %s16, 1
      %s209 = scalar_select %p208, %s16, 1
      %s210 = smul.addr %s209, 8
      %s211 = scalar_lea.vmem %s5, %s210
      %p212 = scmp.lt.s32.totalorder %s16, 1
      %s213 = scalar_select %p212, %s16, 1
      %s214 = smul.addr %s213, 8
      %s215 = scalar_lea.vmem %s0, %s214
      %p216 = scmp.lt.s32.totalorder %s16, 1
      %s217 = scalar_select %p216, %s16, 1
      %s218 = smul.addr %s217, 8
      %s219 = scalar_lea.vmem %s5, %s218
      %v220 = vld [vmem:[%s215] sm:$0xff]
      %v221 = vld [vmem:[%s1] sm:$0xff]
      %v222 = vld [vmem:[%s1 + $0x8] sm:$0xff]
      %v223 = vld [vmem:[%s1 + $0x10] sm:$0xff]
      %v224 = vld [vmem:[%s1 + $0x18] sm:$0xff]
      %v225 = vld [vmem:[%s1 + $0x20] sm:$0xff]
      %v226 = vld [vmem:[%s1 + $0x28] sm:$0xff]
      %v227 = vld [vmem:[%s1 + $0x30] sm:$0xff]
      %v228 = vld [vmem:[%s1 + $0x38] sm:$0xff]
      %v229 = vld [vmem:[%s1 + $0x40] sm:$0xff]
      %v230 = vld [vmem:[%s1 + $0x48] sm:$0xff]
      %v231 = vld [vmem:[%s1 + $0x50] sm:$0xff]
      %v232 = vld [vmem:[%s1 + $0x58] sm:$0xff]
      %v233 = vld [vmem:[%s1 + $0x60] sm:$0xff]
      %v234 = vld [vmem:[%s1 + $0x68] sm:$0xff]
      %v235 = vld [vmem:[%s1 + $0x70] sm:$0xff]
      %v236 = vld [vmem:[%s1 + $0x78] sm:$0xff]
      %v237 = vld [vmem:[%s2] sm:$0x3]
      %v239 = vlaneseq
      %v240 = vshrl.u32 %v239, 7
      %v241 = vsub.s32 0, %v240
      %v242 = vrot.slane %v237, %v241
      %v243 = vlaneseq
      %v244 = vshrl.u32 %v243, 7
      %v245 = vsub.s32 1, %v244
      %v246 = vrot.slane %v237, %v245
      %vm249 = vcmask 523264
      %v251 = vsel %vm249, %v220, 0
      %253 = vmatprep.subr.mxu0 0.0
      %254 = vmatpush1.msra.mxu0 0.0
      %255 = vmatprep.subr.mxu0 0.0
      %256 = vmatpush1.msra.mxu0 0.0
      %257 = vmatprep.subr.mxu0 0.0
      %258 = vmatpush1.msra.mxu0 0.0
      %259 = vmatprep.subr.mxu0 0.0
      %260 = vmatpush1.msra.mxu0 0.0
      %261 = vmatprep.subr.mxu0 0.0
      %262 = vmatpush1.msra.mxu0 0.0
      %263 = vmatprep.subr.mxu0 0.0
      %264 = vmatpush1.msra.mxu0 0.0
      %265 = vmatprep.subr.mxu0 0.0
      %266 = vmatpush1.msra.mxu0 0.0
      %267 = vmatprep.subr.mxu0 0.0
      %268 = vmatpush1.msra.mxu0 0.0
      %269 = vmatprep.subr.mxu0 %v236
      %270 = vmatpush1.msra.mxu0 %v235
      %271 = vmatprep.subr.mxu0 %v234
      %272 = vmatpush1.msra.mxu0 %v233
      %273 = vmatprep.subr.mxu0 %v232
      %274 = vmatpush1.msra.mxu0 %v231
      %275 = vmatprep.subr.mxu0 %v230
      %276 = vmatpush1.msra.mxu0 %v229
      %277 = vmatprep.subr.mxu0 %v228
      %278 = vmatpush1.msra.mxu0 %v227
      %279 = vmatprep.subr.mxu0 %v226
      %280 = vmatpush1.msra.mxu0 %v225
      %281 = vmatprep.subr.mxu0 %v224
      %282 = vmatpush1.msra.mxu0 %v223
      %283 = vmatprep.subr.mxu0 %v222
      %284 = vmatpush1.msra.mxu0 %v221
      %285 = vmatprep.subr.mxu0 0.0
      %286 = vmatpush2.msra.mxu0 0.0
      %287 = vmatprep.subr.mxu0 0.0
      %288 = vmatpush2.msra.mxu0 0.0
      %289 = vmatprep.subr.mxu0 0.0
      %290 = vmatpush2.msra.mxu0 0.0
      %291 = vmatprep.subr.mxu0 0.0
      %292 = vmatpush2.msra.mxu0 0.0
      %293 = vmatprep.subr.mxu0 0.0
      %294 = vmatpush2.msra.mxu0 0.0
      %295 = vmatprep.subr.mxu0 0.0
      %296 = vmatpush2.msra.mxu0 0.0
      %297 = vmatprep.subr.mxu0 0.0
      %298 = vmatpush2.msra.mxu0 0.0
      %299 = vmatprep.subr.mxu0 0.0
      %300 = vmatpush2.msra.mxu0 0.0
      %301 = vmatprep.subr.mxu0 0.0
      %302 = vmatpush2.msra.mxu0 0.0
      %303 = vmatprep.subr.mxu0 0.0
      %304 = vmatpush2.msra.mxu0 0.0
      %305 = vmatprep.subr.mxu0 0.0
      %306 = vmatpush2.msra.mxu0 0.0
      %307 = vmatprep.subr.mxu0 0.0
      %308 = vmatpush2.msra.mxu0 0.0
      %309 = vmatprep.subr.mxu0 0.0
      %310 = vmatpush2.msra.mxu0 0.0
      %311 = vmatprep.subr.mxu0 0.0
      %312 = vmatpush2.msra.mxu0 0.0
      %313 = vmatprep.subr.mxu0 0.0
      %314 = vmatpush2.msra.mxu0 0.0
      %315 = vmatprep.subr.mxu0 0.0
      %316 = vmatpush2.msra.mxu0 0.0
      %317 = vmatprep.mubr.f32.mxu0 0.0
      %318 = vmatmul.mubr.f32.gmra.mxu0 %v251
      %v319 = vpop.f32.mrf.mxu0
      %v320 = vadd.f32 %v242, %v319
      %v321 = vpop.f32.mrf.mxu0
      %v322 = vadd.f32 %v246, %v321
      %323 = vdwg.mxu0
      %v324 = vmax.f32 %v320, 0.0
      %v325 = vmax.f32 %v322, 0.0
      %v326 = vld [vmem:[%s3] sm:$0xff]
      %v327 = vld [vmem:[%s3 + $0x8] sm:$0xff]
      %v328 = vld [vmem:[%s3 + $0x10] sm:$0xff]
      %v329 = vld [vmem:[%s3 + $0x18] sm:$0xff]
      %v330 = vld [vmem:[%s3 + $0x20] sm:$0xff]
      %v331 = vld [vmem:[%s3 + $0x28] sm:$0xff]
      %v332 = vld [vmem:[%s3 + $0x30] sm:$0xff]
      %v333 = vld [vmem:[%s3 + $0x38] sm:$0xff]
      %v334 = vld [vmem:[%s3 + $0x40] sm:$0xff]
      %v335 = vld [vmem:[%s3 + $0x48] sm:$0xff]
      %v336 = vld [vmem:[%s3 + $0x50] sm:$0xff]
      %v337 = vld [vmem:[%s3 + $0x58] sm:$0xff]
      %v338 = vld [vmem:[%s3 + $0x60] sm:$0xff]
      %v339 = vld [vmem:[%s3 + $0x68] sm:$0xff]
      %v340 = vld [vmem:[%s3 + $0x70] sm:$0xff]
      %v341 = vld [vmem:[%s3 + $0x78] sm:$0xff]
      %v342 = vld [vmem:[%s3 + $0x80] sm:$0xff]
      %v343 = vld [vmem:[%s3 + $0x88] sm:$0xff]
      %v344 = vld [vmem:[%s3 + $0x90] sm:$0xff]
      %v345 = vld [vmem:[%s3 + $0x98] sm:$0xff]
      %v346 = vld [vmem:[%s3 + $0xa0] sm:$0xff]
      %v347 = vld [vmem:[%s3 + $0xa8] sm:$0xff]
      %v348 = vld [vmem:[%s3 + $0xb0] sm:$0xff]
      %v349 = vld [vmem:[%s3 + $0xb8] sm:$0xff]
      %v350 = vld [vmem:[%s3 + $0xc0] sm:$0xff]
      %v351 = vld [vmem:[%s3 + $0xc8] sm:$0xff]
      %v352 = vld [vmem:[%s3 + $0xd0] sm:$0xff]
      %v353 = vld [vmem:[%s3 + $0xd8] sm:$0xff]
      %v354 = vld [vmem:[%s3 + $0xe0] sm:$0xff]
      %v355 = vld [vmem:[%s3 + $0xe8] sm:$0xff]
      %v356 = vld [vmem:[%s3 + $0xf0] sm:$0xff]
      %v357 = vld [vmem:[%s3 + $0xf8] sm:$0xff]
      %v358 = vld [vmem:[%s4] sm:$0x1]
      %v360 = vlaneseq
      %v361 = vshrl.u32 %v360, 7
      %v362 = vsub.s32 0, %v361
      %v363 = vrot.slane %v358, %v362
      %365 = vmatprep.subr.mxu0 0.0
      %366 = vmatpush1.msra.mxu0 %v341
      %367 = vmatprep.subr.mxu0 0.0
      %368 = vmatpush1.msra.mxu0 %v340
      %369 = vmatprep.subr.mxu0 0.0
      %370 = vmatpush1.msra.mxu0 %v339
      %371 = vmatprep.subr.mxu0 0.0
      %372 = vmatpush1.msra.mxu0 %v338
      %373 = vmatprep.subr.mxu0 0.0
      %374 = vmatpush1.msra.mxu0 %v337
      %375 = vmatprep.subr.mxu0 0.0
      %376 = vmatpush1.msra.mxu0 %v336
      %377 = vmatprep.subr.mxu0 0.0
      %378 = vmatpush1.msra.mxu0 %v335
      %379 = vmatprep.subr.mxu0 0.0
      %380 = vmatpush1.msra.mxu0 %v334
      %381 = vmatprep.subr.mxu0 0.0
      %382 = vmatpush1.msra.mxu0 %v333
      %383 = vmatprep.subr.mxu0 0.0
      %384 = vmatpush1.msra.mxu0 %v332
      %385 = vmatprep.subr.mxu0 0.0
      %386 = vmatpush1.msra.mxu0 %v331
      %387 = vmatprep.subr.mxu0 0.0
      %388 = vmatpush1.msra.mxu0 %v330
      %389 = vmatprep.subr.mxu0 0.0
      %390 = vmatpush1.msra.mxu0 %v329
      %391 = vmatprep.subr.mxu0 0.0
      %392 = vmatpush1.msra.mxu0 %v328
      %393 = vmatprep.subr.mxu0 0.0
      %394 = vmatpush1.msra.mxu0 %v327
      %395 = vmatprep.subr.mxu0 0.0
      %396 = vmatpush1.msra.mxu0 %v326
      %397 = vmatprep.subr.mxu0 0.0
      %398 = vmatpush2.msra.mxu0 %v357
      %399 = vmatprep.subr.mxu0 0.0
      %400 = vmatpush2.msra.mxu0 %v356
      %401 = vmatprep.subr.mxu0 0.0
      %402 = vmatpush2.msra.mxu0 %v355
      %403 = vmatprep.subr.mxu0 0.0
      %404 = vmatpush2.msra.mxu0 %v354
      %405 = vmatprep.subr.mxu0 0.0
      %406 = vmatpush2.msra.mxu0 %v353
      %407 = vmatprep.subr.mxu0 0.0
      %408 = vmatpush2.msra.mxu0 %v352
      %409 = vmatprep.subr.mxu0 0.0
      %410 = vmatpush2.msra.mxu0 %v351
      %411 = vmatprep.subr.mxu0 0.0
      %412 = vmatpush2.msra.mxu0 %v350
      %413 = vmatprep.subr.mxu0 0.0
      %414 = vmatpush2.msra.mxu0 %v349
      %415 = vmatprep.subr.mxu0 0.0
      %416 = vmatpush2.msra.mxu0 %v348
      %417 = vmatprep.subr.mxu0 0.0
      %418 = vmatpush2.msra.mxu0 %v347
      %419 = vmatprep.subr.mxu0 0.0
      %420 = vmatpush2.msra.mxu0 %v346
      %421 = vmatprep.subr.mxu0 0.0
      %422 = vmatpush2.msra.mxu0 %v345
      %423 = vmatprep.subr.mxu0 0.0
      %424 = vmatpush2.msra.mxu0 %v344
      %425 = vmatprep.subr.mxu0 0.0
      %426 = vmatpush2.msra.mxu0 %v343
      %427 = vmatprep.subr.mxu0 0.0
      %428 = vmatpush2.msra.mxu0 %v342
      %429 = vmatprep.mubr.f32.mxu0 %v325
      %430 = vmatmul.mubr.f32.gmra.mxu0 %v324
      %v431 = vpop.f32.mrf.mxu0
      %v432 = vadd.f32 %v363, %v431
      %v433 = vpop.f32.mrf.mxu0
      %434 = vdwg.mxu0
      %vm435 = vcmask 64512
      %436 = vst.msk [vmem:[%s219] sm:$0xff] %vm435, %v432
      %p437 = scmp.lt.s32.totalorder %s16, 1
      %s438 = scalar_select %p437, %s16, 1
      %s439 = smul.addr %s438, 8
      %s440 = scalar_lea.vmem %s5, %s439
      // Predicated region
      $region41: #{subclustering_forward.1} parent=39 // pred_check
        %p441 = pneg %p144
      $region42: #{subclustering_forward.1} parent=39 // pred_check_branch
        %443 = sbr.rel (%p441) target = $region44
      $region43: #{subclustering_forward.1} parent=39 // pred_region
        _
      $region44: #{subclustering_forward.1} parent=39 // pred_fallthru
        _
    $region40: #{subclustering_forward.1} parent=5 // pred_fallthru
      _
    %p444 = scmp.le.s32.totalorder 2, %s11
    // Predicated region
    $region45: #{subclustering_forward.1} parent=5 // pred_check
      %p445 = pneg %p444
    $region46: #{subclustering_forward.1} parent=5 // pred_check_branch
      %447 = sbr.rel (%p445) target = $region48
    $region47: #{subclustering_forward.1} parent=5 // pred_region
      %s448 = ssub.s32 %s11, 2
      // Predicated region
      $region49: #{subclustering_forward.1} parent=47 // pred_check
        %p449 = pneg %p150
      $region50: #{subclustering_forward.1} parent=47 // pred_check_branch
        %451 = sbr.rel (%p449) target = $region52
      $region51: #{subclustering_forward.1} parent=47 // pred_region
        %p452 = scmp.lt.s32.totalorder %s17, 1
        %s453 = scalar_select %p452, %s17, 1
        %s454 = smul.addr %s453, 8
        %s455 = scalar_lea.vmem %s5, %s454
      $region52: #{subclustering_forward.1} parent=47 // pred_fallthru
        _
    $region48: #{subclustering_forward.1} parent=5 // pred_fallthru
      _
  $region6: #{subclustering_forward.1} parent=0 // loop_footer
    %s15 = sadd.s32 1, %s11
  $region7: #{subclustering_forward.1} parent=0 // loop_footer_branch
    %10 = sbr.rel target = $region3
  $region8: #{subclustering_forward.1} parent=0 // loop_exit
    _

</llo_original>
